<compile_context>
chip_gen: v7x
topology: tpu7x:2x2x1
jax: 0.10.0
libtpu: 0.0.40
codegen_flags: <defaults>
</compile_context>

<pallas_src>
import jax
import jax.numpy as jnp
from jax.experimental import pallas as pl
from jax.experimental.pallas import tpu as pltpu


def _round_up(x, m):
    return ((x + m - 1) // m) * m


def _tpu_generation():
    try:
        kind = jax.devices()[0].device_kind.lower()
    except Exception:
        return "unknown"
    if "v5" in kind:
        return "v5e"
    if "v6" in kind:
        return "v6e"
    if "v7" in kind:
        return "v7x"
    return "unknown"


# (row-tile target, vocab-tile target, scoped-VMEM cap bytes) per generation.
# tm targets sit near each chip's compute/HBM balance point for the W2 stream
# (v5e ~240, v7x ~320, v6e ~640 flops/byte); v7x only has 64 MiB VMEM.
_GEN_CONFIG = {
    "v5e": (256, 2048, 96 * 1024 * 1024),
    "v6e": (1024, 1024, 100 * 1024 * 1024),
    "v7x": (512, 2048, 52 * 1024 * 1024),
    "unknown": (512, 1024, 48 * 1024 * 1024),
}


def mlm_mlp_kernel(x_ref, w1_ref, ln_ref, w2_ref, b2_ref, o_ref, h_ref):
    # Grid: (row_tile i, vocab_tile j); j innermost and sequential.
    # x_ref:  (TM, in_feat) bf16
    # w1_ref: (in_feat, H)  bf16
    # ln_ref: (3, H)        f32, rows = [b1, gamma, beta]
    # w2_ref: (H, TV)       bf16
    # b2_ref: (1, TV)       f32
    # o_ref:  (TM, TV)      out dtype
    # h_ref:  (TM, H)       bf16 scratch; persists across vocab tiles.

    @pl.when(pl.program_id(1) == 0)
    def _compute_hidden():
        # Linear 1 (MXU, bf16 operands, f32 accumulation) + bias.
        h = jnp.dot(x_ref[...], w1_ref[...],
                    preferred_element_type=jnp.float32)
        h = h + ln_ref[0:1, :]
        # ReLU
        h = jnp.maximum(h, 0.0)
        # LayerNorm over the hidden dim (f32 stats, torch eps = 1e-5).
        mean = jnp.mean(h, axis=-1, keepdims=True)
        centered = h - mean
        var = jnp.mean(centered * centered, axis=-1, keepdims=True)
        inv = jax.lax.rsqrt(var + 1e-5)
        h = centered * inv * ln_ref[1:2, :] + ln_ref[2:3, :]
        h_ref[...] = h.astype(h_ref.dtype)

    # Linear 2 (MXU) + bias -> this vocab tile of the logits.
    out = jnp.dot(h_ref[...], w2_ref[...],
                  preferred_element_type=jnp.float32)
    o_ref[...] = (out + b2_ref[...]).astype(o_ref.dtype)


def mask_lm_forward(X, pre_position, params, *, tm=None, tv=None,
                    out_dtype=jnp.float32, return_padded=False):
    """Reproduce MaskLM.forward semantics.

    X:            (batch, seq, mlm_in_feature) float32
    pre_position: (batch, mask_lens) int32
    returns:      (batch, mask_lens, vocab_size) out_dtype
                  (or (padded_logits, N, V) if return_padded=True)
    """
    batch = X.shape[0]
    mask_lens = pre_position.shape[1]
    in_feat = X.shape[-1]

    # --- gather glue (equivalent to X[a, pre_position, :]) ---
    # Cast to bf16 first so the gather moves half the bytes.
    # TODO(synk): fuse this gather via scalar-prefetched row indices + manual DMA.
    X_b = X.astype(jnp.bfloat16)
    pos_flat = pre_position.reshape(-1)                        # (batch*mask_lens,)
    a = jnp.repeat(jnp.arange(batch, dtype=jnp.int32), mask_lens)
    new_X = X_b[a, pos_flat, :]                                # (N, in_feat) bf16

    N = batch * mask_lens
    w1, b1, gamma, beta, w2, b2 = (params["w1"], params["b1"], params["gamma"],
                                   params["beta"], params["w2"], params["b2"])
    H = w1.shape[1]
    V = w2.shape[1]

    gen = _tpu_generation()
    tm_target, tv_target, vmem_cap = _GEN_CONFIG[gen]
    if tm is not None:
        tm_target = tm
    if tv is not None:
        tv_target = tv

    out_bytes = jnp.dtype(out_dtype).itemsize

    # --- tile sizes (bf16 packs 16 sublanes/vreg; lanes are 128-wide) ---
    tm_eff = min(_round_up(tm_target, 16), _round_up(N, 16))
    tv_eff = min(_round_up(tv_target, 128), _round_up(V, 128))

    # v7x megacore: guarantee >= 2 row tiles for large N so both TCs get work.
    if gen == "v7x":
        n16 = _round_up(N, 16)
        if n16 >= 512 and tm_eff >= n16:
            tm_eff = max(256, _round_up((n16 + 1) // 2, 128))

    # --- fit the double-buffered working set inside the per-gen VMEM cap ---
    def vmem_estimate(tm_e, tv_e):
        return (2 * tm_e * in_feat * 2            # x tile (bf16)
                + 2 * in_feat * H * 2             # w1 (bf16)
                + 2 * 3 * H * 4                   # packed b1/gamma/beta (f32)
                + 2 * (H * tv_e * 2 + tv_e * 4)   # w2 + b2 tiles
                + 2 * tm_e * tv_e * out_bytes     # out tile
                + tm_e * H * 2)                   # resident h scratch (bf16)

    headroom = 4 * 1024 * 1024
    while vmem_estimate(tm_eff, tv_eff) + headroom > vmem_cap:
        if tv_eff > 512:
            tv_eff //= 2
        elif tm_eff > 128:
            tm_eff = max(128, tm_eff // 2)
        elif tv_eff > 128:
            tv_eff //= 2
        else:
            break

    n_pad = _round_up(N, tm_eff)
    v_pad = _round_up(V, tv_eff)

    # --- padding (pad rows dropped/masked later; pad vocab cols are zeros) ---
    x_p = jnp.pad(new_X, ((0, n_pad - N), (0, 0)))
    w1_b = w1.astype(jnp.bfloat16)
    ln_packed = jnp.stack([b1, gamma, beta]).astype(jnp.float32)    # (3, H)
    w2_p = jnp.pad(w2.astype(jnp.bfloat16), ((0, 0), (0, v_pad - V)))
    b2_p = jnp.pad(b2.astype(jnp.float32), (0, v_pad - V)).reshape(1, -1)

    grid = (n_pad // tm_eff, v_pad // tv_eff)

    vmem_limit = int(min(max(vmem_estimate(tm_eff, tv_eff) + headroom,
                             16 * 1024 * 1024), vmem_cap))

    # Advisory cost estimate so XLA schedules neighbouring ops around the call.
    flops = 2 * n_pad * in_feat * H + 2 * n_pad * H * v_pad
    bytes_accessed = (grid[0] * H * v_pad * 2        # W2 re-read once per row tile
                      + n_pad * in_feat * 2          # gathered activations (bf16)
                      + n_pad * v_pad * out_bytes    # logits writeback
                      + in_feat * H * 2 + v_pad * 4 + 3 * H * 4)
    cost = pl.CostEstimate(flops=int(flops), transcendentals=int(n_pad),
                           bytes_accessed=int(bytes_accessed))

    out_flat = pl.pallas_call(
        mlm_mlp_kernel,
        out_shape=jax.ShapeDtypeStruct((n_pad, v_pad), out_dtype),
        grid_spec=pltpu.PrefetchScalarGridSpec(
            num_scalar_prefetch=0,
            grid=grid,
            in_specs=[
                pl.BlockSpec((tm_eff, in_feat), lambda i, j: (i, 0)),   # x rows
                pl.BlockSpec((in_feat, H), lambda i, j: (0, 0)),        # w1
                pl.BlockSpec((3, H), lambda i, j: (0, 0)),              # b1/gamma/beta
                pl.BlockSpec((H, tv_eff), lambda i, j: (0, j)),         # w2 tile
                pl.BlockSpec((1, tv_eff), lambda i, j: (0, j)),         # b2 tile
            ],
            out_specs=pl.BlockSpec((tm_eff, tv_eff), lambda i, j: (i, j)),
            scratch_shapes=[pltpu.VMEM((tm_eff, H), jnp.bfloat16)],     # h
        ),
        compiler_params=pltpu.CompilerParams(
            dimension_semantics=("parallel", "arbitrary"),
            vmem_limit_bytes=vmem_limit,
        ),
        cost_estimate=cost,
    )(x_p, w1_b, ln_packed, w2_p, b2_p)

    if return_padded:
        # Skip the N x V slice copy entirely; caller masks pad rows/cols
        # downstream (e.g. in the MLM loss).
        return out_flat, N, V

    if n_pad == N and v_pad == V:
        return out_flat.reshape(batch, mask_lens, V)    # metadata reshape only
    return out_flat[:N, :V].reshape(batch, mask_lens, V)


def init_params(key, mlm_in_feature, num_hiddens, vocab_size):
    k1, k2, k3, k4 = jax.random.split(key, 4)
    scale1 = 1.0 / jnp.sqrt(mlm_in_feature)
    scale2 = 1.0 / jnp.sqrt(num_hiddens)
    return {
        "w1": jax.random.uniform(k1, (mlm_in_feature, num_hiddens),
                                 jnp.float32, -scale1, scale1),
        "b1": jax.random.uniform(k2, (num_hiddens,), jnp.float32, -scale1, scale1),
        "gamma": jnp.ones((num_hiddens,), jnp.float32),
        "beta": jnp.zeros((num_hiddens,), jnp.float32),
        "w2": jax.random.uniform(k3, (num_hiddens, vocab_size),
                                 jnp.float32, -scale2, scale2),
        "b2": jax.random.uniform(k4, (vocab_size,), jnp.float32, -scale2, scale2),
    }


def reference_forward(X, pre_position, params):
    batch = X.shape[0]
    mask_lens = pre_position.shape[1]
    pos_flat = pre_position.reshape(-1)
    a = jnp.repeat(jnp.arange(batch, dtype=jnp.int32), mask_lens)
    new_X = X[a, pos_flat, :]
    h = new_X @ params["w1"] + params["b1"]
    h = jnp.maximum(h, 0.0)
    mean = jnp.mean(h, axis=-1, keepdims=True)
    var = jnp.mean((h - mean) ** 2, axis=-1, keepdims=True)
    h = (h - mean) / jnp.sqrt(var + 1e-5) * params["gamma"] + params["beta"]
    out = h @ params["w2"] + params["b2"]
    return out.reshape(batch, mask_lens, -1)


if __name__ == "__main__":
    key = jax.random.PRNGKey(0)
    k_x, k_pos, k_p = jax.random.split(key, 3)

    batch, seq, mlm_in_feature = 2, 8, 32
    num_hiddens, vocab_size = 32, 128
    mask_lens = 3

    X = jax.random.normal(k_x, (batch, seq, mlm_in_feature), jnp.float32)
    pre_position = jax.random.randint(k_pos, (batch, mask_lens), 0, seq,
                                      dtype=jnp.int32)
    params = init_params(k_p, mlm_in_feature, num_hiddens, vocab_size)

    out = mask_lm_forward(X, pre_position, params)
    out = jax.block_until_ready(out)

    ref = reference_forward(X, pre_position, params)
    assert out.shape == (batch, mask_lens, vocab_size)
    # bf16 MXU operands with f32 accumulation -> looser tolerance than pure f32.
    assert jnp.allclose(out, ref, atol=5e-2, rtol=5e-2), "mismatch vs reference"

    print("KERNEL_OK")
</pallas_src>

<mosaic_0001>
module attributes {stable_mosaic.version = 11 : i64} {
  func.func @mlm_mlp_kernel(%arg0: i32, %arg1: i32, %arg2: memref<16x32xbf16, #tpu.memory_space<vmem>>, %arg3: memref<32x32xbf16, #tpu.memory_space<vmem>>, %arg4: memref<3x32xf32, #tpu.memory_space<vmem>>, %arg5: memref<32x128xbf16, #tpu.memory_space<vmem>>, %arg6: memref<1x128xf32, #tpu.memory_space<vmem>>, %arg7: memref<16x128xf32, #tpu.memory_space<vmem>>, %arg8: memref<16x32xbf16, #tpu.memory_space<vmem>>) attributes {dimension_semantics = [#tpu.dimension_semantics<parallel>, #tpu.dimension_semantics<arbitrary>], iteration_bounds = array<i64: 1, 1>, scalar_prefetch = 0 : i64, scratch_operands = 1 : i64, tpu.core_type = #tpu.core_type<tc>, window_params = [{transform_indices = @transform_0, window_bounds = array<i64: 16, 32>}, {pipeline_mode = #tpu.pipeline_mode<synchronous>, transform_indices = @transform_1, window_bounds = array<i64: 32, 32>}, {pipeline_mode = #tpu.pipeline_mode<synchronous>, transform_indices = @transform_2, window_bounds = array<i64: 3, 32>}, {transform_indices = @transform_3, window_bounds = array<i64: 32, 128>}, {transform_indices = @transform_4, window_bounds = array<i64: 1, 128>}, {transform_indices = @transform_5, window_bounds = array<i64: 16, 128>}]} {
    %c0_i32 = arith.constant 0 : i32
    %0 = arith.cmpi eq, %arg1, %c0_i32 : i32
    %1 = arith.extui %0 : i1 to i32
    %c0_i32_0 = arith.constant 0 : i32
    %2 = arith.cmpi ne, %1, %c0_i32_0 : i32
    scf.if %2 {
      %c0_8 = arith.constant 0 : index
      %c0_9 = arith.constant 0 : index
      %10 = vector.load %arg2[%c0_8, %c0_9] : memref<16x32xbf16, #tpu.memory_space<vmem>>, vector<16x32xbf16>
      %c0_10 = arith.constant 0 : index
      %c0_11 = arith.constant 0 : index
      %11 = vector.load %arg3[%c0_10, %c0_11] : memref<32x32xbf16, #tpu.memory_space<vmem>>, vector<32x32xbf16>
      %cst_12 = arith.constant dense<0.000000e+00> : vector<16x32xf32>
      %12 = tpu.matmul %10, %11, %cst_12 {dimension_numbers = #tpu.dot_dimension_numbers<[1], [0], [0], [1], [0, 0, 1, 1], [], []>} : vector<16x32xbf16>, vector<32x32xbf16>, vector<16x32xf32> -> vector<16x32xf32>
      %c0_13 = arith.constant 0 : index
      %c0_14 = arith.constant 0 : index
      %13 = vector.load %arg4[%c0_13, %c0_14] : memref<3x32xf32, #tpu.memory_space<vmem>>, vector<1x32xf32>
      %14 = vector.broadcast %13 : vector<1x32xf32> to vector<16x32xf32>
      %15 = arith.addf %12, %14 : vector<16x32xf32>
      %cst_15 = arith.constant 0.000000e+00 : f32
      %16 = vector.broadcast %cst_15 : f32 to vector<16x32xf32>
      %17 = arith.maximumf %15, %16 : vector<16x32xf32>
      %cst_16 = arith.constant dense<0.000000e+00> : vector<16xf32>
      %18 = vector.multi_reduction <add>, %17, %cst_16 [1] : vector<16x32xf32> to vector<16xf32>
      %19 = vector.shape_cast %18 : vector<16xf32> to vector<16x1xf32>
      %cst_17 = arith.constant 3.200000e+01 : f32
      %20 = vector.broadcast %cst_17 : f32 to vector<16x1xf32>
      %21 = arith.divf %19, %20 : vector<16x1xf32>
      %22 = vector.broadcast %21 : vector<16x1xf32> to vector<16x32xf32>
      %23 = arith.subf %17, %22 : vector<16x32xf32>
      %24 = arith.mulf %23, %23 : vector<16x32xf32>
      %cst_18 = arith.constant dense<0.000000e+00> : vector<16xf32>
      %25 = vector.multi_reduction <add>, %24, %cst_18 [1] : vector<16x32xf32> to vector<16xf32>
      %26 = vector.shape_cast %25 : vector<16xf32> to vector<16x1xf32>
      %cst_19 = arith.constant 3.200000e+01 : f32
      %27 = vector.broadcast %cst_19 : f32 to vector<16x1xf32>
      %28 = arith.divf %26, %27 : vector<16x1xf32>
      %cst_20 = arith.constant 9.99999974E-6 : f32
      %29 = vector.broadcast %cst_20 : f32 to vector<16x1xf32>
      %30 = arith.addf %28, %29 : vector<16x1xf32>
      %31 = math.rsqrt %30 : vector<16x1xf32>
      %32 = vector.broadcast %31 : vector<16x1xf32> to vector<16x32xf32>
      %33 = arith.mulf %23, %32 : vector<16x32xf32>
      %c1 = arith.constant 1 : index
      %c0_21 = arith.constant 0 : index
      %34 = vector.load %arg4[%c1, %c0_21] : memref<3x32xf32, #tpu.memory_space<vmem>>, vector<1x32xf32>
      %35 = vector.broadcast %34 : vector<1x32xf32> to vector<16x32xf32>
      %36 = arith.mulf %33, %35 : vector<16x32xf32>
      %c2 = arith.constant 2 : index
      %c0_22 = arith.constant 0 : index
      %37 = vector.load %arg4[%c2, %c0_22] : memref<3x32xf32, #tpu.memory_space<vmem>>, vector<1x32xf32>
      %38 = vector.broadcast %37 : vector<1x32xf32> to vector<16x32xf32>
      %39 = arith.addf %36, %38 : vector<16x32xf32>
      %40 = arith.truncf %39 : vector<16x32xf32> to vector<16x32xbf16>
      %c0_23 = arith.constant 0 : index
      %c0_24 = arith.constant 0 : index
      %41 = vector.load %arg8[%c0_23, %c0_24] : memref<16x32xbf16, #tpu.memory_space<vmem>>, vector<16x32xbf16>
      tpu.vector_store %arg8[%c0_23, %c0_24], %40 {strides = array<i32>} : memref<16x32xbf16, #tpu.memory_space<vmem>>, vector<16x32xbf16>,
    } else {
    }
    %c0 = arith.constant 0 : index
    %c0_1 = arith.constant 0 : index
    %3 = vector.load %arg8[%c0, %c0_1] : memref<16x32xbf16, #tpu.memory_space<vmem>>, vector<16x32xbf16>
    %c0_2 = arith.constant 0 : index
    %c0_3 = arith.constant 0 : index
    %4 = vector.load %arg5[%c0_2, %c0_3] : memref<32x128xbf16, #tpu.memory_space<vmem>>, vector<32x128xbf16>
    %cst = arith.constant dense<0.000000e+00> : vector<16x128xf32>
    %5 = tpu.matmul %3, %4, %cst {dimension_numbers = #tpu.dot_dimension_numbers<[1], [0], [0], [1], [0, 0, 1, 1], [], []>} : vector<16x32xbf16>, vector<32x128xbf16>, vector<16x128xf32> -> vector<16x128xf32>
    %c0_4 = arith.constant 0 : index
    %c0_5 = arith.constant 0 : index
    %6 = vector.load %arg6[%c0_4, %c0_5] : memref<1x128xf32, #tpu.memory_space<vmem>>, vector<1x128xf32>
    %7 = vector.broadcast %6 : vector<1x128xf32> to vector<16x128xf32>
    %8 = arith.addf %5, %7 : vector<16x128xf32>
    %c0_6 = arith.constant 0 : index
    %c0_7 = arith.constant 0 : index
    %9 = vector.load %arg7[%c0_6, %c0_7] : memref<16x128xf32, #tpu.memory_space<vmem>>, vector<16x128xf32>
    tpu.vector_store %arg7[%c0_6, %c0_7], %8 {strides = array<i32>} : memref<16x128xf32, #tpu.memory_space<vmem>>, vector<16x128xf32>,
    return
  }
  func.func @transform_0(%arg0: i32, %arg1: i32) -> (i32, i32) {
    %c0_i32 = arith.constant 0 : i32
    %c0_i32_0 = arith.constant 0 : i32
    return %arg0, %c0_i32 : i32, i32
  }
  func.func @transform_1(%arg0: i32, %arg1: i32) -> (i32, i32) {
    %c0_i32 = arith.constant 0 : i32
    %c0_i32_0 = arith.constant 0 : i32
    %c0_i32_1 = arith.constant 0 : i32
    return %c0_i32, %c0_i32_0 : i32, i32
  }
  func.func @transform_2(%arg0: i32, %arg1: i32) -> (i32, i32) {
    %c0_i32 = arith.constant 0 : i32
    %c0_i32_0 = arith.constant 0 : i32
    %c0_i32_1 = arith.constant 0 : i32
    return %c0_i32, %c0_i32_0 : i32, i32
  }
  func.func @transform_3(%arg0: i32, %arg1: i32) -> (i32, i32) {
    %c0_i32 = arith.constant 0 : i32
    %c0_i32_0 = arith.constant 0 : i32
    return %c0_i32, %arg1 : i32, i32
  }
  func.func @transform_4(%arg0: i32, %arg1: i32) -> (i32, i32) {
    %c0_i32 = arith.constant 0 : i32
    %c0_i32_0 = arith.constant 0 : i32
    return %c0_i32, %arg1 : i32, i32
  }
  func.func @transform_5(%arg0: i32, %arg1: i32) -> (i32, i32) {
    %c0_i32 = arith.constant 0 : i32
    return %arg0, %arg1 : i32, i32
  }
}

</mosaic_0001>

<llo_original>
// kernel: tpu_custom_call.1
$region0: #{tpu_custom_call.1}
  #allocation0 [shape = 'u32[]', space=smem, size = 0x4, offset = 0x4, fixed_abs, tag = 'smem constant byte address 0x4 - core index']
  #allocation1 [shape = 'u32[144,128]{1,0:T(1,128)}', space=vmem, size = 0x12000, scoped, tag = 'internal scratch']
  #allocation2 [shape = 'bf16[16,32]{1,0:T(16,128)(2,1)}', space=vmem, size = 0x1000, scoped, tag = 'scratch operand']
  %s0 = inlined_call_operand.hbm [shape: bf16[16,32], index: 0, kind: input, shape index: {}]
  %s1 = inlined_call_operand.hbm [shape: bf16[32,32], index: 1, kind: input, shape index: {}]
  %s2 = inlined_call_operand.vmem [shape: f32[3,32], index: 2, kind: input, shape index: {}]
  %s3 = inlined_call_operand.hbm [shape: bf16[32,128], index: 3, kind: input, shape index: {}]
  %s4 = inlined_call_operand.vmem [shape: f32[1,128], index: 4, kind: input, shape index: {}]
  %s5 = inlined_call_operand.hbm [shape: f32[16,128], index: 5, kind: output, shape index: {}]
  %s6 = sld [smem:[#allocation0]]
  $region46: #{tpu_custom_call.1} parent=0
    _
  %s8 = ssub.s32 1, %s6
  %s9 = scalar_select 0, %s8, %s6
  $region1: #{tpu_custom_call.1} parent=0
    #allocation3 [shape = 'u8[4096]{0}', space=vmem, size = 0x1000, scoped, tag = 'input window, operand 0, single buffered']
    #allocation4 [shape = 's32[1]{0}', space=sflag, size = 0x4, scoped, tag = 'scoped memory for tpu_custom_call.1']
    #allocation5 [shape = 's32[1]{0}', space=sflag, size = 0x4, scoped, tag = 'scoped memory for tpu_custom_call.1']
    #allocation6 [shape = 'u8[8192]{0}', space=vmem, size = 0x2000, scoped, tag = 'input window, operand 1, single buffered']
    #allocation7 [shape = 's32[1]{0}', space=sflag, size = 0x4, scoped, tag = 'scoped memory for tpu_custom_call.1']
    #allocation8 [shape = 'u8[8192]{0}', space=vmem, size = 0x2000, scoped, tag = 'input window, operand 3, single buffered']
    #allocation9 [shape = 'u8[8192]{0}', space=vmem, size = 0x2000, scoped, tag = 'output window, operand 0, single buffered']
    %10 = vsyncpa [#allocation4], 0
    %11 = vsyncpa [#allocation7], 0
    %12 = vsyncpa [#allocation5], 0
    // Predicated region
    $region2: #{tpu_custom_call.1} parent=1 // pred_check
      _
    $region3: #{tpu_custom_call.1} parent=1 // pred_check_branch
      %14 = sbr.rel (0) target = $region5
    $region4: #{tpu_custom_call.1} parent=1 // pred_region
      %s16 = ssub.s32 128, 128
      %17 = vsyncadd [#allocation4], %s16
      %s18 = sshll.u32 [#allocation3], 4
      %s19 = int_to_ptr.vmem [resolvable:$true] %s18
      %24 = dma.hbm_to_vmem [thread:$0]  %s0, 128, %s19, [#allocation4], 64, 64, 4
    $region5: #{tpu_custom_call.1} parent=1 // pred_fallthru
      _
    // Predicated region
    $region6: #{tpu_custom_call.1} parent=1 // pred_check
      _
    $region7: #{tpu_custom_call.1} parent=1 // pred_check_branch
      %26 = sbr.rel (0) target = $region9
    $region8: #{tpu_custom_call.1} parent=1 // pred_region
      %s28 = ssub.s32 256, 256
      %29 = vsyncadd [#allocation7], %s28
      %s30 = sshll.u32 [#allocation6], 4
      %s31 = int_to_ptr.vmem [resolvable:$true] %s30
      %36 = dma.hbm_to_vmem [thread:$0]  %s1, 256, %s31, [#allocation7], 64, 64, 4
    $region9: #{tpu_custom_call.1} parent=1 // pred_fallthru
      _
    // Predicated region
    $region10: #{tpu_custom_call.1} parent=1 // pred_check
      _
    $region11: #{tpu_custom_call.1} parent=1 // pred_check_branch
      %38 = sbr.rel (0) target = $region13
    $region12: #{tpu_custom_call.1} parent=1 // pred_region
      _
    $region13: #{tpu_custom_call.1} parent=1 // pred_fallthru
      _
    // Predicated region
    $region14: #{tpu_custom_call.1} parent=1 // pred_check
      _
    $region15: #{tpu_custom_call.1} parent=1 // pred_check_branch
      %40 = sbr.rel (0) target = $region17
    $region16: #{tpu_custom_call.1} parent=1 // pred_region
      %s42 = ssub.s32 256, 256
      %43 = vsyncadd [#allocation7], %s42
      %s44 = sshll.u32 [#allocation8], 4
      %s45 = int_to_ptr.vmem [resolvable:$true] %s44
      %50 = dma.hbm_to_vmem [thread:$0]  %s3, 256, %s45, [#allocation7], 64, 64, 4
    $region17: #{tpu_custom_call.1} parent=1 // pred_fallthru
      _
    // Predicated region
    $region18: #{tpu_custom_call.1} parent=1 // pred_check
      _
    $region19: #{tpu_custom_call.1} parent=1 // pred_check_branch
      %52 = sbr.rel (0) target = $region21
    $region20: #{tpu_custom_call.1} parent=1 // pred_region
      _
    $region21: #{tpu_custom_call.1} parent=1 // pred_fallthru
      _
    // Predicated region
    $region22: #{tpu_custom_call.1} parent=1 // pred_check
      _
    $region23: #{tpu_custom_call.1} parent=1 // pred_check_branch
      %54 = sbr.rel (0) target = $region25
    $region24: #{tpu_custom_call.1} parent=1 // pred_region
      %55 = dma.done [#allocation4], 128
    $region25: #{tpu_custom_call.1} parent=1 // pred_fallthru
      _
    // Predicated region
    $region26: #{tpu_custom_call.1} parent=1 // pred_check
      _
    $region27: #{tpu_custom_call.1} parent=1 // pred_check_branch
      %57 = sbr.rel (0) target = $region29
    $region28: #{tpu_custom_call.1} parent=1 // pred_region
      %58 = dma.done [#allocation7], 256
    $region29: #{tpu_custom_call.1} parent=1 // pred_fallthru
      _
    // Predicated region
    $region30: #{tpu_custom_call.1} parent=1 // pred_check
      _
    $region31: #{tpu_custom_call.1} parent=1 // pred_check_branch
      %60 = sbr.rel (0) target = $region33
    $region32: #{tpu_custom_call.1} parent=1 // pred_region
      %61 = dma.done [#allocation7], 256
    $region33: #{tpu_custom_call.1} parent=1 // pred_fallthru
      _
    %p63 = scmp.eq.s32.totalorder 0, 0
    // Predicated region
    $region34: #{tpu_custom_call.1} parent=1 // pred_check
      %p64 = pneg %p63
    $region35: #{tpu_custom_call.1} parent=1 // pred_check_branch
      %66 = sbr.rel (%p64) target = $region37
    $region36: #{tpu_custom_call.1} parent=1 // pred_region
      %v67 = vld [vmem:[#allocation3] sm:$0xf]
      %v68 = vld [vmem:[#allocation3 + $0x4] sm:$0xf]
      %v69 = vld [vmem:[#allocation6] sm:$0xf]
      %v70 = vld [vmem:[#allocation6 + $0x4] sm:$0xf]
      %v71 = vld [vmem:[#allocation6 + $0x8] sm:$0xf]
      %v72 = vld [vmem:[#allocation6 + $0xc] sm:$0xf]
      %v73 = vld [vmem:[%s2] sm:$0x1]
      %v74 = vlaneseq
      %v75 = vshrl.u32 %v74, 7
      %v76 = vsub.s32 0, %v75
      %v77 = vrot.slane %v73, %v76
      %v80 = vunpack.c.l.b16 %v67
      %v81 = vunpack.c.l.b16 %v68
      %v82 = vpack.c.b16 %v81, %v80
      %v87 = vunpack.c.l.b16 %v69
      %v88 = vunpack.c.l.b16 %v70
      %v89 = vunpack.c.l.b16 %v71
      %v90 = vunpack.c.l.b16 %v72
      %v91 = vpack.c.b16 %v88, %v87
      %v92 = vpack.c.b16 %v90, %v89
      %vm95 = vcmask 261120
      %v97 = vsel %vm95, %v82, 0
      %99 = vmatprep.subr.bf16.mxu0 0
      %100 = vmatpush1.bf16.msra.mxu0 %v91
      %101 = vmatprep.subr.bf16.mxu0 0
      %102 = vmatpush1.bf16.msra.mxu0 %v92
      %103 = vmatprep.subr.bf16.mxu0 0
      %104 = vmatpush1.bf16.msra.mxu0 0
      %105 = vmatprep.subr.bf16.mxu0 0
      %106 = vmatpush1.bf16.msra.mxu0 0
      %107 = vmatprep.subr.bf16.mxu0 0
      %108 = vmatpush1.bf16.msra.mxu0 0
      %109 = vmatprep.subr.bf16.mxu0 0
      %110 = vmatpush1.bf16.msra.mxu0 0
      %111 = vmatprep.subr.bf16.mxu0 0
      %112 = vmatpush1.bf16.msra.mxu0 0
      %113 = vmatprep.subr.bf16.mxu0 0
      %114 = vmatpush1.bf16.msra.mxu0 0
      %115 = vmatprep.subr.bf16.mxu0 0
      %116 = vmatpush1.bf16.msra.mxu0 0
      %117 = vmatprep.subr.bf16.mxu0 0
      %118 = vmatpush1.bf16.msra.mxu0 0
      %119 = vmatprep.subr.bf16.mxu0 0
      %120 = vmatpush1.bf16.msra.mxu0 0
      %121 = vmatprep.subr.bf16.mxu0 0
      %122 = vmatpush1.bf16.msra.mxu0 0
      %123 = vmatprep.subr.bf16.mxu0 0
      %124 = vmatpush1.bf16.msra.mxu0 0
      %125 = vmatprep.subr.bf16.mxu0 0
      %126 = vmatpush1.bf16.msra.mxu0 0
      %127 = vmatprep.subr.bf16.mxu0 0
      %128 = vmatpush1.bf16.msra.mxu0 0
      %129 = vmatprep.subr.bf16.mxu0 0
      %130 = vmatpush1.bf16.msra.mxu0 0
      %131 = vmatprep.mubr.bf16.mxu0 0
      %132 = vmatmul.mubr.bf16.gmra.mrb[0].mxu0 %v97
      %v133 = vpop.f32.mrb[0].mxu0
      %v134 = vadd.f32 %v77, %v133
      %v135 = vpop.f32.mrb[0].mxu0
      %v136 = vpop.f32.mrb[0].mxu0
      %v137 = vadd.f32 %v77, %v136
      %v138 = vpop.f32.mrb[0].mxu0
      %139 = vdwg.mxu0
      %v140 = vmax.f32 %v134, 0.0
      %v141 = vmax.f32 %v137, 0.0
      %v142 = vsel %vm95, %v140, 0.0
      %143 = vadd.xlane.f32.xlu0 %v142
      %v144 = vpop.xlane.xlu0 %143
      %v145 = vsel %vm95, %v141, 0.0
      %146 = vadd.xlane.f32.xlu0 %v145
      %v147 = vpop.xlane.xlu0 %146
      %v148 = vrcp.pop 32.0
      %v149 = vmul.f32 %v144, %v148
      %v150 = vmul.f32 %v147, %v148
      %v151 = vsub.f32 %v140, %v149
      %v152 = vsub.f32 %v141, %v150
      %v153 = vmul.f32 %v151, %v151
      %v154 = vmul.f32 %v152, %v152
      %v155 = vsel %vm95, %v153, 0.0
      %156 = vadd.xlane.f32.xlu0 %v155
      %v157 = vpop.xlane.xlu0 %156
      %v158 = vsel %vm95, %v154, 0.0
      %159 = vadd.xlane.f32.xlu0 %v158
      %v160 = vpop.xlane.xlu0 %159
      %v161 = vmul.f32 %v157, %v148
      %v162 = vmul.f32 %v160, %v148
      %v163 = vadd.f32 %v161, 1e-05
      %v164 = vadd.f32 %v162, 1e-05
      %v165 = vrsqrt.pop %v163
      %v166 = vrsqrt.pop %v164
      %v167 = vmul.f32 %v151, %v165
      %v168 = vmul.f32 %v152, %v166
      %v169 = vld [vmem:[%s2 + $0x1] sm:$0x1]
      %v170 = vlaneseq
      %v171 = vshrl.u32 %v170, 7
      %v172 = vsub.s32 0, %v171
      %v173 = vrot.slane %v169, %v172
      %v174 = vmul.f32 %v167, %v173
      %v175 = vmul.f32 %v168, %v173
      %v176 = vld [vmem:[%s2 + $0x2] sm:$0x1]
      %v177 = vlaneseq
      %v178 = vshrl.u32 %v177, 7
      %v179 = vsub.s32 0, %v178
      %v180 = vrot.slane %v176, %v179
      %v181 = vadd.f32 %v174, %v180
      %v182 = vadd.f32 %v175, %v180
      %v183 = vpack.c.bf16 %v182, %v181
      %184 = vst.msk [vmem:[#allocation2] sm:$0xff] %vm95, %v183
    $region37: #{tpu_custom_call.1} parent=1 // pred_fallthru
      _
    %v185 = vld [vmem:[#allocation2] sm:$0xff]
    %v186 = vld [vmem:[#allocation8] sm:$0xf]
    %v187 = vld [vmem:[#allocation8 + $0x4] sm:$0xf]
    %v188 = vld [vmem:[#allocation8 + $0x8] sm:$0xf]
    %v189 = vld [vmem:[#allocation8 + $0xc] sm:$0xf]
    %v190 = vld [vmem:[%s4] sm:$0x1]
    %v192 = vlaneseq
    %v193 = vshrl.u32 %v192, 7
    %v194 = vsub.s32 0, %v193
    %v195 = vrot.slane %v190, %v194
    %v201 = vunpack.c.l.b16 %v186
    %v202 = vunpack.c.l.b16 %v187
    %v203 = vunpack.c.l.b16 %v188
    %v204 = vunpack.c.l.b16 %v189
    %v205 = vpack.c.b16 %v202, %v201
    %v206 = vpack.c.b16 %v204, %v203
    %vm209 = vcmask 261120
    %v211 = vsel %vm209, %v185, 0
    %213 = vmatprep.subr.bf16.mxu0 0
    %214 = vmatpush1.bf16.msra.mxu0 %v205
    %215 = vmatprep.subr.bf16.mxu0 0
    %216 = vmatpush1.bf16.msra.mxu0 %v206
    %217 = vmatprep.subr.bf16.mxu0 0
    %218 = vmatpush1.bf16.msra.mxu0 0
    %219 = vmatprep.subr.bf16.mxu0 0
    %220 = vmatpush1.bf16.msra.mxu0 0
    %221 = vmatprep.subr.bf16.mxu0 0
    %222 = vmatpush1.bf16.msra.mxu0 0
    %223 = vmatprep.subr.bf16.mxu0 0
    %224 = vmatpush1.bf16.msra.mxu0 0
    %225 = vmatprep.subr.bf16.mxu0 0
    %226 = vmatpush1.bf16.msra.mxu0 0
    %227 = vmatprep.subr.bf16.mxu0 0
    %228 = vmatpush1.bf16.msra.mxu0 0
    %229 = vmatprep.subr.bf16.mxu0 0
    %230 = vmatpush1.bf16.msra.mxu0 0
    %231 = vmatprep.subr.bf16.mxu0 0
    %232 = vmatpush1.bf16.msra.mxu0 0
    %233 = vmatprep.subr.bf16.mxu0 0
    %234 = vmatpush1.bf16.msra.mxu0 0
    %235 = vmatprep.subr.bf16.mxu0 0
    %236 = vmatpush1.bf16.msra.mxu0 0
    %237 = vmatprep.subr.bf16.mxu0 0
    %238 = vmatpush1.bf16.msra.mxu0 0
    %239 = vmatprep.subr.bf16.mxu0 0
    %240 = vmatpush1.bf16.msra.mxu0 0
    %241 = vmatprep.subr.bf16.mxu0 0
    %242 = vmatpush1.bf16.msra.mxu0 0
    %243 = vmatprep.subr.bf16.mxu0 0
    %244 = vmatpush1.bf16.msra.mxu0 0
    %245 = vmatprep.mubr.bf16.mxu0 0
    %246 = vmatmul.mubr.bf16.gmra.mrb[0].mxu0 %v211
    %v247 = vpop.f32.mrb[0].mxu0
    %v248 = vadd.f32 %v195, %v247
    %v249 = vpop.f32.mrb[0].mxu0
    %v250 = vpop.f32.mrb[0].mxu0
    %v251 = vadd.f32 %v195, %v250
    %v252 = vpop.f32.mrb[0].mxu0
    %253 = vdwg.mxu0
    %254 = vst [vmem:[#allocation9] sm:$0xff] %v248
    %255 = vst [vmem:[#allocation9 + $0x8] sm:$0xff] %v251
    // Predicated region
    $region38: #{tpu_custom_call.1} parent=1 // pred_check
      _
    $region39: #{tpu_custom_call.1} parent=1 // pred_check_branch
      %257 = sbr.rel (0) target = $region41
    $region40: #{tpu_custom_call.1} parent=1 // pred_region
      %s259 = ssub.s32 256, 256
      %260 = vsyncadd [#allocation5], %s259
      %s261 = sshll.u32 [#allocation9], 4
      %s262 = int_to_ptr.vmem [resolvable:$true] %s261
      %267 = dma.vmem_to_hbm [thread:$0]  %s262, 256, %s5, [#allocation5], 128, 128, 8
    $region41: #{tpu_custom_call.1} parent=1 // pred_fallthru
      _
    // Predicated region
    $region42: #{tpu_custom_call.1} parent=1 // pred_check
      _
    $region43: #{tpu_custom_call.1} parent=1 // pred_check_branch
      %269 = sbr.rel (0) target = $region45
    $region44: #{tpu_custom_call.1} parent=1 // pred_region
      %270 = dma.done [#allocation5], 256
    $region45: #{tpu_custom_call.1} parent=1 // pred_fallthru
      _
    %271 = vsyncpa [#allocation4], 1
    %272 = vsyncpa [#allocation7], 1
    %273 = vsyncpa [#allocation5], 1

</llo_original>
